<compile_context>
chip_gen: v7x
topology: tpu7x:2x2x1
jax: 0.10.0
libtpu: 0.0.40
codegen_flags: <defaults>
</compile_context>

<pallas_src>
import functools

import jax
import jax.numpy as jnp
from jax.experimental import pallas as pl
from jax.experimental.pallas import tpu as pltpu


def _init_hidden_kernel(x_ref, cheb_ref, theta_ref, w1_ref, b1_ref,
                        w2_ref, b2_ref, out_ref, *, K, R):
    """One batch-block per grid step; everything stays (rows, lanes) 2-D."""
    x2d = x_ref[0]                                             # (R, F*T) bf16
    cdt = x2d.dtype

    # --- Chebyshev graph conv -------------------------------------------
    # Stage 1 (fused over K and folded batches): vertically stacked,
    # batch-block-diagonal operator:  y[k*R + r, :] = (T_k^T @ x)[r, :]
    y = jnp.dot(cheb_ref[...], x2d,
                preferred_element_type=jnp.float32).astype(cdt)     # (K*R, F*T)

    # Stage 2: per-k block-diagonal theta (kron(theta_k, I_T)) applied directly
    # in the (rows, F*T) layout.  Row slices are sublane-aligned (R % 8 == 0).
    acc = jnp.dot(y[0:R, :], theta_ref[0],
                  preferred_element_type=jnp.float32)
    for k in range(1, K):                                      # K small & static
        acc = acc + jnp.dot(y[k * R:(k + 1) * R, :], theta_ref[k],
                            preferred_element_type=jnp.float32)
    g = jnp.maximum(acc, 0.0).astype(cdt)                      # cheb_conv ReLU, (R, F*T)

    # --- time_conv1 (Linear T_in -> 64) + ReLU; block-diag over features ---
    h1 = jnp.maximum(
        jnp.dot(g, w1_ref[...], preferred_element_type=jnp.float32)
        + b1_ref[...], 0.0).astype(cdt)                        # (R, F*H)

    # --- time_conv2 (Linear 64 -> T_hidden); block-diag over features ----
    h2 = (jnp.dot(h1, w2_ref[...], preferred_element_type=jnp.float32)
          + b2_ref[...])                                       # (R, F*Th) f32
    out_ref[0] = h2                                            # lane-dense store


def _pick_batch_block(B, N, *, row_cap=256, min_grid=2):
    """Largest divisor of B with BB*N <= row_cap rows per grid step, while
    keeping at least `min_grid` grid steps (so both v7x TensorCores get work).
    row_cap=256 fills the v6e MXU M dimension when N is small."""
    cap = max(1, row_cap // N)
    best = 1
    for d in range(1, B + 1):
        if B % d != 0 or d > cap:
            continue
        if (B // d) >= min_grid or B < min_grid:
            best = d
    return best


def _forward_impl(x, cheb_vcat, theta_big, w1_big, b1_big, w2_big, b2_big,
                  *, BB, R, R_pad):
    """x: (B, N, F, T) -> (B, N, F, Th).  All weight expansions are inputs."""
    B, N, F, T = x.shape
    K = theta_big.shape[0]
    FT = F * T
    FH = w1_big.shape[1]
    FTh = w2_big.shape[1]
    Th = FTh // F
    G = B // BB

    # Lane layout f*T+t == native memory order of x -> pure reshape, no transpose.
    x_fold = x.reshape(G, R, FT).astype(cheb_vcat.dtype)
    if R_pad != R:
        x_fold = jnp.pad(x_fold, ((0, 0), (0, R_pad - R), (0, 0)))

    # Explicit VMEM budget from the actual resident set (everything is
    # double-buffered by the default pipeline), clamped to [32 MiB, 64 MiB].
    bpe = x_fold.dtype.itemsize
    resident = (
        R_pad * FT * bpe + R_pad * FTh * 4
        + cheb_vcat.size * cheb_vcat.dtype.itemsize
        + theta_big.size * theta_big.dtype.itemsize
        + w1_big.size * w1_big.dtype.itemsize
        + b1_big.size * b1_big.dtype.itemsize
        + w2_big.size * w2_big.dtype.itemsize
        + b2_big.size * b2_big.dtype.itemsize
    )
    vmem_limit = int(min(max(2 * resident + (4 << 20), 32 << 20), 64 << 20))

    kernel = functools.partial(_init_hidden_kernel, K=K, R=R_pad)
    out = pl.pallas_call(
        kernel,
        out_shape=jax.ShapeDtypeStruct((G, R_pad, FTh), jnp.float32),
        grid_spec=pltpu.PrefetchScalarGridSpec(
            num_scalar_prefetch=0,
            grid=(G,),
            in_specs=[
                pl.BlockSpec((1, R_pad, FT), lambda g: (g, 0, 0)),   # x (folded)
                pl.BlockSpec((K * R_pad, R_pad), lambda g: (0, 0)),  # cheb_vcat
                pl.BlockSpec((K, FT, FT), lambda g: (0, 0, 0)),      # theta_big
                pl.BlockSpec((FT, FH), lambda g: (0, 0)),            # w1_big
                pl.BlockSpec((1, FH), lambda g: (0, 0)),             # b1_big (f32)
                pl.BlockSpec((FH, FTh), lambda g: (0, 0)),           # w2_big
                pl.BlockSpec((1, FTh), lambda g: (0, 0)),            # b2_big (f32)
            ],
            out_specs=pl.BlockSpec((1, R_pad, FTh), lambda g: (g, 0, 0)),
        ),
        compiler_params=pltpu.CompilerParams(
            dimension_semantics=("parallel",),
            vmem_limit_bytes=vmem_limit),
    )(x_fold, cheb_vcat, theta_big, w1_big, b1_big, w2_big, b2_big)

    if R_pad != R:
        out = out[:, :R, :]
    # (G, BB*N, F*Th) -> (B, N, F, Th): pure layout reshape.
    return out.reshape(B, N, F, Th)


class InitHiddenStateEncoderPallas:
    """Pallas port of init_hidden_state_encoder.  Weight expansions are built
    once at construction (and once per new batch size for the graph operator),
    never inside the jitted forward."""

    def __init__(self, cheb_polynomials, thetas, w1, b1, w2, b2,
                 *, row_cap=256, min_grid=2, param_dtype=jnp.bfloat16):
        f32 = jnp.float32
        cheb = jnp.asarray(cheb_polynomials, f32)
        thetas = jnp.asarray(thetas, f32)
        w1 = jnp.asarray(w1, f32)
        b1 = jnp.asarray(b1, f32)
        w2 = jnp.asarray(w2, f32)
        b2 = jnp.asarray(b2, f32)

        self.K, self.N = cheb.shape[0], cheb.shape[1]
        self.F = thetas.shape[1]
        self.T, self.H = w1.shape
        self.Th = w2.shape[1]
        self.row_cap = row_cap
        self.min_grid = min_grid
        self.param_dtype = param_dtype

        eye_t = jnp.eye(self.T, dtype=f32)
        eye_f = jnp.eye(self.F, dtype=f32)
        # theta_big[k] = kron(theta_k, I_T): applies theta in the (rows, F*T) layout.
        self.theta_big = (jnp.einsum('kio,tu->kitou', thetas, eye_t)
                          .reshape(self.K, self.F * self.T, self.F * self.T)
                          .astype(param_dtype))
        # w1_big = kron(I_F, w1), w2_big = kron(I_F, w2): block-diag over features.
        self.w1_big = jnp.kron(eye_f, w1).astype(param_dtype)          # (F*T, F*H)
        self.b1_big = jnp.tile(b1, self.F).reshape(1, self.F * self.H)  # f32
        self.w2_big = jnp.kron(eye_f, w2).astype(param_dtype)          # (F*H, F*Th)
        self.b2_big = jnp.tile(b2, self.F).reshape(1, self.F * self.Th)  # f32
        self._chebT = jnp.transpose(cheb, (0, 2, 1))                   # T_k^T, f32
        self._fwd_cache = {}

    def _build_for_batch(self, B):
        BB = _pick_batch_block(B, self.N, row_cap=self.row_cap,
                               min_grid=self.min_grid)
        R = BB * self.N
        R_pad = -(-R // 8) * 8        # keep per-k row slices sublane-aligned
        eye_bb = jnp.eye(BB, dtype=jnp.float32)
        cheb_blk = (jnp.einsum('knm,bc->kbncm', self._chebT, eye_bb)
                    .reshape(self.K, R, R))
        if R_pad != R:
            cheb_blk = jnp.pad(cheb_blk,
                               ((0, 0), (0, R_pad - R), (0, R_pad - R)))
        cheb_vcat = cheb_blk.reshape(self.K * R_pad, R_pad).astype(self.param_dtype)
        fwd = jax.jit(functools.partial(_forward_impl, BB=BB, R=R, R_pad=R_pad))
        entry = (fwd, cheb_vcat)
        self._fwd_cache[B] = entry
        return entry

    def __call__(self, x, T=None):
        # TODO(synk): time-embedding argument `T` is unused (matches reference).
        entry = self._fwd_cache.get(x.shape[0])
        if entry is None:
            entry = self._build_for_batch(x.shape[0])
        fwd, cheb_vcat = entry
        return fwd(x, cheb_vcat, self.theta_big, self.w1_big, self.b1_big,
                   self.w2_big, self.b2_big)


def reference_forward(x, cheb_polys, thetas, w1, b1, w2, b2):
    """Pure-JAX f32 reference mirroring the PyTorch forward pass."""
    K = cheb_polys.shape[0]
    g = jnp.zeros(x.shape[:2] + (thetas.shape[2], x.shape[3]), jnp.float32)
    for k in range(K):
        rhs = jnp.einsum('mn,bmft->bnft', cheb_polys[k], x)      # graph aggregation
        g = g + jnp.einsum('bnft,fo->bnot', rhs, thetas[k])
    g = jnp.maximum(g, 0.0)                                      # cheb_conv ReLU
    h1 = jnp.maximum(jnp.einsum('bnft,th->bnfh', g, w1) + b1, 0.0)
    return jnp.einsum('bnfh,ho->bnfo', h1, w2) + b2


if __name__ == "__main__":
    B, N, F, T_in, T_hid, K, H = 2, 16, 4, 8, 32, 3, 64

    key = jax.random.PRNGKey(0)
    ks = jax.random.split(key, 7)
    x = jax.random.normal(ks[0], (B, N, F, T_in), jnp.float32)
    cheb = jax.random.normal(ks[1], (K, N, N), jnp.float32) * 0.1
    cheb = 0.5 * (cheb + jnp.transpose(cheb, (0, 2, 1)))   # symmetric like real Cheb polys
    thetas = jax.random.normal(ks[2], (K, F, F), jnp.float32) * 0.5
    w1 = jax.random.normal(ks[3], (T_in, H), jnp.float32) * (1.0 / jnp.sqrt(T_in))
    b1 = jax.random.normal(ks[4], (H,), jnp.float32) * 0.01
    w2 = jax.random.normal(ks[5], (H, T_hid), jnp.float32) * (1.0 / jnp.sqrt(H))
    b2 = jax.random.normal(ks[6], (T_hid,), jnp.float32) * 0.01

    encoder = InitHiddenStateEncoderPallas(cheb, thetas, w1, b1, w2, b2)
    out = jax.block_until_ready(encoder(x, None))

    ref = reference_forward(x, cheb, thetas, w1, b1, w2, b2)
    assert out.shape == (B, N, F, T_hid), out.shape
    max_err = float(jnp.max(jnp.abs(out - ref)))
    # bf16 MXU operands with f32 accumulation -> relaxed tolerance vs f32 reference.
    assert max_err < 5e-2, f"max_err={max_err}"
    print("KERNEL_OK")
</pallas_src>

<mosaic_0001>
module attributes {stable_mosaic.version = 11 : i64} {
  func.func @_init_hidden_kernel(%arg0: i32, %arg1: memref<1x16x32xbf16, #tpu.memory_space<vmem>>, %arg2: memref<48x16xbf16, #tpu.memory_space<vmem>>, %arg3: memref<3x32x32xbf16, #tpu.memory_space<vmem>>, %arg4: memref<32x256xbf16, #tpu.memory_space<vmem>>, %arg5: memref<1x256xf32, #tpu.memory_space<vmem>>, %arg6: memref<256x128xbf16, #tpu.memory_space<vmem>>, %arg7: memref<1x128xf32, #tpu.memory_space<vmem>>, %arg8: memref<1x16x128xf32, #tpu.memory_space<vmem>>) attributes {dimension_semantics = [#tpu.dimension_semantics<parallel>], iteration_bounds = array<i64: 2>, scalar_prefetch = 0 : i64, scratch_operands = 0 : i64, tpu.core_type = #tpu.core_type<tc>, window_params = [{transform_indices = @transform_0, window_bounds = array<i64: 1, 16, 32>}, {pipeline_mode = #tpu.pipeline_mode<synchronous>, transform_indices = @transform_1, window_bounds = array<i64: 48, 16>}, {pipeline_mode = #tpu.pipeline_mode<synchronous>, transform_indices = @transform_2, window_bounds = array<i64: 3, 32, 32>}, {pipeline_mode = #tpu.pipeline_mode<synchronous>, transform_indices = @transform_3, window_bounds = array<i64: 32, 256>}, {pipeline_mode = #tpu.pipeline_mode<synchronous>, transform_indices = @transform_4, window_bounds = array<i64: 1, 256>}, {pipeline_mode = #tpu.pipeline_mode<synchronous>, transform_indices = @transform_5, window_bounds = array<i64: 256, 128>}, {pipeline_mode = #tpu.pipeline_mode<synchronous>, transform_indices = @transform_6, window_bounds = array<i64: 1, 128>}, {transform_indices = @transform_7, window_bounds = array<i64: 1, 16, 128>}]} {
    %c0 = arith.constant 0 : index
    %c0_0 = arith.constant 0 : index
    %c0_1 = arith.constant 0 : index
    %0 = vector.load %arg1[%c0, %c0_0, %c0_1] : memref<1x16x32xbf16, #tpu.memory_space<vmem>>, vector<1x16x32xbf16>
    %1 = vector.shape_cast %0 : vector<1x16x32xbf16> to vector<16x32xbf16>
    %c0_2 = arith.constant 0 : index
    %c0_3 = arith.constant 0 : index
    %2 = vector.load %arg2[%c0_2, %c0_3] : memref<48x16xbf16, #tpu.memory_space<vmem>>, vector<48x16xbf16>
    %cst = arith.constant dense<0.000000e+00> : vector<48x32xf32>
    %3 = tpu.matmul %2, %1, %cst {dimension_numbers = #tpu.dot_dimension_numbers<[1], [0], [0], [1], [0, 0, 1, 1], [], []>} : vector<48x16xbf16>, vector<16x32xbf16>, vector<48x32xf32> -> vector<48x32xf32>
    %4 = arith.truncf %3 : vector<48x32xf32> to vector<48x32xbf16>
    %5 = vector.extract_strided_slice %4 {offsets = [0, 0], sizes = [16, 32], strides = [1, 1]} : vector<48x32xbf16> to vector<16x32xbf16>
    %c0_4 = arith.constant 0 : index
    %c0_5 = arith.constant 0 : index
    %c0_6 = arith.constant 0 : index
    %6 = vector.load %arg3[%c0_4, %c0_5, %c0_6] : memref<3x32x32xbf16, #tpu.memory_space<vmem>>, vector<1x32x32xbf16>
    %7 = vector.shape_cast %6 : vector<1x32x32xbf16> to vector<32x32xbf16>
    %cst_7 = arith.constant dense<0.000000e+00> : vector<16x32xf32>
    %8 = tpu.matmul %5, %7, %cst_7 {dimension_numbers = #tpu.dot_dimension_numbers<[1], [0], [0], [1], [0, 0, 1, 1], [], []>} : vector<16x32xbf16>, vector<32x32xbf16>, vector<16x32xf32> -> vector<16x32xf32>
    %9 = vector.extract_strided_slice %4 {offsets = [16, 0], sizes = [16, 32], strides = [1, 1]} : vector<48x32xbf16> to vector<16x32xbf16>
    %c1 = arith.constant 1 : index
    %c0_8 = arith.constant 0 : index
    %c0_9 = arith.constant 0 : index
    %10 = vector.load %arg3[%c1, %c0_8, %c0_9] : memref<3x32x32xbf16, #tpu.memory_space<vmem>>, vector<1x32x32xbf16>
    %11 = vector.shape_cast %10 : vector<1x32x32xbf16> to vector<32x32xbf16>
    %cst_10 = arith.constant dense<0.000000e+00> : vector<16x32xf32>
    %12 = tpu.matmul %9, %11, %cst_10 {dimension_numbers = #tpu.dot_dimension_numbers<[1], [0], [0], [1], [0, 0, 1, 1], [], []>} : vector<16x32xbf16>, vector<32x32xbf16>, vector<16x32xf32> -> vector<16x32xf32>
    %13 = arith.addf %8, %12 : vector<16x32xf32>
    %14 = vector.extract_strided_slice %4 {offsets = [32, 0], sizes = [16, 32], strides = [1, 1]} : vector<48x32xbf16> to vector<16x32xbf16>
    %c2 = arith.constant 2 : index
    %c0_11 = arith.constant 0 : index
    %c0_12 = arith.constant 0 : index
    %15 = vector.load %arg3[%c2, %c0_11, %c0_12] : memref<3x32x32xbf16, #tpu.memory_space<vmem>>, vector<1x32x32xbf16>
    %16 = vector.shape_cast %15 : vector<1x32x32xbf16> to vector<32x32xbf16>
    %cst_13 = arith.constant dense<0.000000e+00> : vector<16x32xf32>
    %17 = tpu.matmul %14, %16, %cst_13 {dimension_numbers = #tpu.dot_dimension_numbers<[1], [0], [0], [1], [0, 0, 1, 1], [], []>} : vector<16x32xbf16>, vector<32x32xbf16>, vector<16x32xf32> -> vector<16x32xf32>
    %18 = arith.addf %13, %17 : vector<16x32xf32>
    %cst_14 = arith.constant 0.000000e+00 : f32
    %19 = vector.broadcast %cst_14 : f32 to vector<16x32xf32>
    %20 = arith.maximumf %18, %19 : vector<16x32xf32>
    %21 = arith.truncf %20 : vector<16x32xf32> to vector<16x32xbf16>
    %c0_15 = arith.constant 0 : index
    %c0_16 = arith.constant 0 : index
    %22 = vector.load %arg4[%c0_15, %c0_16] : memref<32x256xbf16, #tpu.memory_space<vmem>>, vector<32x256xbf16>
    %cst_17 = arith.constant dense<0.000000e+00> : vector<16x256xf32>
    %23 = tpu.matmul %21, %22, %cst_17 {dimension_numbers = #tpu.dot_dimension_numbers<[1], [0], [0], [1], [0, 0, 1, 1], [], []>} : vector<16x32xbf16>, vector<32x256xbf16>, vector<16x256xf32> -> vector<16x256xf32>
    %c0_18 = arith.constant 0 : index
    %c0_19 = arith.constant 0 : index
    %24 = vector.load %arg5[%c0_18, %c0_19] : memref<1x256xf32, #tpu.memory_space<vmem>>, vector<1x256xf32>
    %25 = vector.broadcast %24 : vector<1x256xf32> to vector<16x256xf32>
    %26 = arith.addf %23, %25 : vector<16x256xf32>
    %cst_20 = arith.constant 0.000000e+00 : f32
    %27 = vector.broadcast %cst_20 : f32 to vector<16x256xf32>
    %28 = arith.maximumf %26, %27 : vector<16x256xf32>
    %29 = arith.truncf %28 : vector<16x256xf32> to vector<16x256xbf16>
    %c0_21 = arith.constant 0 : index
    %c0_22 = arith.constant 0 : index
    %30 = vector.load %arg6[%c0_21, %c0_22] : memref<256x128xbf16, #tpu.memory_space<vmem>>, vector<256x128xbf16>
    %cst_23 = arith.constant dense<0.000000e+00> : vector<16x128xf32>
    %31 = tpu.matmul %29, %30, %cst_23 {dimension_numbers = #tpu.dot_dimension_numbers<[1], [0], [0], [1], [0, 0, 1, 1], [], []>} : vector<16x256xbf16>, vector<256x128xbf16>, vector<16x128xf32> -> vector<16x128xf32>
    %c0_24 = arith.constant 0 : index
    %c0_25 = arith.constant 0 : index
    %32 = vector.load %arg7[%c0_24, %c0_25] : memref<1x128xf32, #tpu.memory_space<vmem>>, vector<1x128xf32>
    %33 = vector.broadcast %32 : vector<1x128xf32> to vector<16x128xf32>
    %34 = arith.addf %31, %33 : vector<16x128xf32>
    %c0_26 = arith.constant 0 : index
    %c0_27 = arith.constant 0 : index
    %c0_28 = arith.constant 0 : index
    %35 = vector.load %arg8[%c0_26, %c0_27, %c0_28] : memref<1x16x128xf32, #tpu.memory_space<vmem>>, vector<1x16x128xf32>
    %36 = vector.shape_cast %35 : vector<1x16x128xf32> to vector<16x128xf32>
    %37 = vector.shape_cast %34 : vector<16x128xf32> to vector<1x16x128xf32>
    tpu.vector_store %arg8[%c0_26, %c0_27, %c0_28], %37 {strides = array<i32>} : memref<1x16x128xf32, #tpu.memory_space<vmem>>, vector<1x16x128xf32>,
    return
  }
  func.func @transform_0(%arg0: i32) -> (i32, i32, i32) {
    %c0_i32 = arith.constant 0 : i32
    %c0_i32_0 = arith.constant 0 : i32
    %c0_i32_1 = arith.constant 0 : i32
    return %arg0, %c0_i32, %c0_i32_0 : i32, i32, i32
  }
  func.func @transform_1(%arg0: i32) -> (i32, i32) {
    %c0_i32 = arith.constant 0 : i32
    %c0_i32_0 = arith.constant 0 : i32
    %c0_i32_1 = arith.constant 0 : i32
    return %c0_i32, %c0_i32_0 : i32, i32
  }
  func.func @transform_2(%arg0: i32) -> (i32, i32, i32) {
    %c0_i32 = arith.constant 0 : i32
    %c0_i32_0 = arith.constant 0 : i32
    %c0_i32_1 = arith.constant 0 : i32
    %c0_i32_2 = arith.constant 0 : i32
    return %c0_i32, %c0_i32_0, %c0_i32_1 : i32, i32, i32
  }
  func.func @transform_3(%arg0: i32) -> (i32, i32) {
    %c0_i32 = arith.constant 0 : i32
    %c0_i32_0 = arith.constant 0 : i32
    %c0_i32_1 = arith.constant 0 : i32
    return %c0_i32, %c0_i32_0 : i32, i32
  }
  func.func @transform_4(%arg0: i32) -> (i32, i32) {
    %c0_i32 = arith.constant 0 : i32
    %c0_i32_0 = arith.constant 0 : i32
    %c0_i32_1 = arith.constant 0 : i32
    return %c0_i32, %c0_i32_0 : i32, i32
  }
  func.func @transform_5(%arg0: i32) -> (i32, i32) {
    %c0_i32 = arith.constant 0 : i32
    %c0_i32_0 = arith.constant 0 : i32
    %c0_i32_1 = arith.constant 0 : i32
    return %c0_i32, %c0_i32_0 : i32, i32
  }
  func.func @transform_6(%arg0: i32) -> (i32, i32) {
    %c0_i32 = arith.constant 0 : i32
    %c0_i32_0 = arith.constant 0 : i32
    %c0_i32_1 = arith.constant 0 : i32
    return %c0_i32, %c0_i32_0 : i32, i32
  }
  func.func @transform_7(%arg0: i32) -> (i32, i32, i32) {
    %c0_i32 = arith.constant 0 : i32
    %c0_i32_0 = arith.constant 0 : i32
    %c0_i32_1 = arith.constant 0 : i32
    return %arg0, %c0_i32, %c0_i32_0 : i32, i32, i32
  }
}

</mosaic_0001>

<llo_original>
// kernel: _forward_impl.1
$region0: #{_forward_impl.1}
  #allocation0 [shape = 'u32[]', space=smem, size = 0x4, offset = 0x4, fixed_abs, tag = 'smem constant byte address 0x4 - core index']
  #allocation1 [shape = 'u32[144,128]{1,0:T(1,128)}', space=vmem, size = 0x12000, scoped, tag = 'internal scratch']
  %s0 = inlined_call_operand.vmem [shape: bf16[2,16,32], index: 0, kind: input, shape index: {}]
  %s1 = inlined_call_operand.vmem [shape: bf16[48,16], index: 1, kind: input, shape index: {}]
  %s2 = inlined_call_operand.vmem [shape: bf16[3,32,32], index: 2, kind: input, shape index: {}]
  %s3 = inlined_call_operand.hbm [shape: bf16[32,256], index: 3, kind: input, shape index: {}]
  %s4 = inlined_call_operand.vmem [shape: f32[1,256], index: 4, kind: input, shape index: {}]
  %s5 = inlined_call_operand.vmem [shape: bf16[256,128], index: 5, kind: input, shape index: {}]
  %s6 = inlined_call_operand.vmem [shape: f32[1,128], index: 6, kind: input, shape index: {}]
  %s7 = inlined_call_operand.vmem [shape: f32[2,16,128], index: 7, kind: output, shape index: {}]
  %s8 = sld [smem:[#allocation0]]
  $region65: #{_forward_impl.1} parent=0
    _
  %s10 = ssub.s32 1, %s8
  %s11 = scalar_select 0, %s10, %s8
  $region1: #{_forward_impl.1} parent=0
    #allocation2 [shape = 'u8[16384]{0}', space=vmem, size = 0x4000, scoped, tag = 'input window, operand 3, single buffered']
    #allocation3 [shape = 's32[2]{0}', space=sflag, size = 0x8, scoped, tag = 'scoped memory for _forward_impl.1']
    %12 = vsyncpa [#allocation3], 0
    loop: start=0, step=1, limit=4
    $region2: #{_forward_impl.1} parent=1 // loop_pre_header
      _
    $region3: #{_forward_impl.1} parent=1 // loop_header
      %s14 = sphi 0, %s18
      %p15 = scmp.ge.s32.totalorder %s14, 4
      %s24 = sphi 0, %s26
      %s27 = sphi 0, %s24
      %s28 = sphi 0, %s27
      %s44 = sphi 0, %s28
      %s48 = sphi 0, %s48
      %s50 = sphi 0, %s48
      %s51 = sphi 0, %s50
      %s65 = sphi 0, %s51
      %s69 = sphi 0, %s69
      %s71 = sphi 0, %s69
      %s72 = sphi 0, %s71
      %s86 = sphi 0, %s72
      %s90 = sphi 0, %s90
      %s92 = sphi 0, %s90
      %s93 = sphi 0, %s92
      %s107 = sphi 0, %s93
      %s111 = sphi 0, %s111
      %s113 = sphi 0, %s111
      %s114 = sphi 0, %s113
      %s128 = sphi 0, %s114
      %s132 = sphi 0, %s132
      %s134 = sphi 0, %s132
      %s135 = sphi 0, %s134
      %s149 = sphi 0, %s135
      %s153 = sphi 0, %s153
      %s155 = sphi 0, %s153
      %s156 = sphi 0, %s155
      %s170 = sphi 0, %s156
      %s176 = sphi 0, %s178
      %s179 = sphi 0, %s176
      %s180 = sphi 0, %s179
      %s196 = sphi 0, %s180
    $region4: #{_forward_impl.1} parent=1 // loop_header_branch
      %17 = sbr.rel (%p15) target = $region8
    $region5: #{_forward_impl.1} parent=1 // loop_body
      %s19 = ssub.s32 %s14, 1
      %s20 = ssub.s32 %s14, 2
      %s21 = sadd.s32 %s14, 1
      %s22 = ssub.s32 %s14, %s21
      %p23 = scmp.eq.s32.totalorder %s22, 0
      %s25 = sadd.s32 %s24, 1
      %s26 = scalar_select %p23, %s24, %s25
      %p29 = pneg %p23
      %p30 = scmp.eq.s32.totalorder %s14, 1
      %p31 = por %p29, %p30
      %p32 = scmp.ne.s32.totalorder %s24, %s27
      %p33 = scmp.eq.s32.totalorder %s14, 0
      %p34 = por %p32, %p33
      %p35 = scmp.ne.s32.totalorder %s24, %s27
      %p36 = scmp.eq.s32.totalorder %s19, 1
      %p37 = por %p35, %p36
      %p38 = scmp.ne.s32.totalorder %s27, %s28
      %p39 = scmp.eq.s32.totalorder %s19, 0
      %p40 = por %p38, %p39
      %p41 = scmp.ne.s32.totalorder %s27, %s28
      %p42 = scmp.eq.s32.totalorder %s20, 1
      %p43 = por %p41, %p42
      %p45 = scmp.ne.s32.totalorder %s28, %s44
      %p46 = scmp.eq.s32.totalorder %s20, 0
      %p47 = por %p45, %p46
      %s49 = sadd.s32 %s48, 1
      %p52 = scmp.eq.s32.totalorder %s14, 1
      %p53 = scmp.ne.s32.totalorder %s48, %s50
      %p54 = scmp.eq.s32.totalorder %s14, 0
      %p55 = por %p53, %p54
      %p56 = scmp.ne.s32.totalorder %s48, %s50
      %p57 = scmp.eq.s32.totalorder %s19, 1
      %p58 = por %p56, %p57
      %p59 = scmp.ne.s32.totalorder %s50, %s51
      %p60 = scmp.eq.s32.totalorder %s19, 0
      %p61 = por %p59, %p60
      %p62 = scmp.ne.s32.totalorder %s50, %s51
      %p63 = scmp.eq.s32.totalorder %s20, 1
      %p64 = por %p62, %p63
      %p66 = scmp.ne.s32.totalorder %s51, %s65
      %p67 = scmp.eq.s32.totalorder %s20, 0
      %p68 = por %p66, %p67
      %s70 = sadd.s32 %s69, 1
      %p73 = scmp.eq.s32.totalorder %s14, 1
      %p74 = scmp.ne.s32.totalorder %s69, %s71
      %p75 = scmp.eq.s32.totalorder %s14, 0
      %p76 = por %p74, %p75
      %p77 = scmp.ne.s32.totalorder %s69, %s71
      %p78 = scmp.eq.s32.totalorder %s19, 1
      %p79 = por %p77, %p78
      %p80 = scmp.ne.s32.totalorder %s71, %s72
      %p81 = scmp.eq.s32.totalorder %s19, 0
      %p82 = por %p80, %p81
      %p83 = scmp.ne.s32.totalorder %s71, %s72
      %p84 = scmp.eq.s32.totalorder %s20, 1
      %p85 = por %p83, %p84
      %p87 = scmp.ne.s32.totalorder %s72, %s86
      %p88 = scmp.eq.s32.totalorder %s20, 0
      %p89 = por %p87, %p88
      %s91 = sadd.s32 %s90, 1
      %p94 = scmp.eq.s32.totalorder %s14, 1
      %p95 = scmp.ne.s32.totalorder %s90, %s92
      %p96 = scmp.eq.s32.totalorder %s14, 0
      %p97 = por %p95, %p96
      %p98 = scmp.ne.s32.totalorder %s90, %s92
      %p99 = scmp.eq.s32.totalorder %s19, 1
      %p100 = por %p98, %p99
      %p101 = scmp.ne.s32.totalorder %s92, %s93
      %p102 = scmp.eq.s32.totalorder %s19, 0
      %p103 = por %p101, %p102
      %p104 = scmp.ne.s32.totalorder %s92, %s93
      %p105 = scmp.eq.s32.totalorder %s20, 1
      %p106 = por %p104, %p105
      %p108 = scmp.ne.s32.totalorder %s93, %s107
      %p109 = scmp.eq.s32.totalorder %s20, 0
      %p110 = por %p108, %p109
      %s112 = sadd.s32 %s111, 1
      %p115 = scmp.eq.s32.totalorder %s14, 1
      %p116 = scmp.ne.s32.totalorder %s111, %s113
      %p117 = scmp.eq.s32.totalorder %s14, 0
      %p118 = por %p116, %p117
      %p119 = scmp.ne.s32.totalorder %s111, %s113
      %p120 = scmp.eq.s32.totalorder %s19, 1
      %p121 = por %p119, %p120
      %p122 = scmp.ne.s32.totalorder %s113, %s114
      %p123 = scmp.eq.s32.totalorder %s19, 0
      %p124 = por %p122, %p123
      %p125 = scmp.ne.s32.totalorder %s113, %s114
      %p126 = scmp.eq.s32.totalorder %s20, 1
      %p127 = por %p125, %p126
      %p129 = scmp.ne.s32.totalorder %s114, %s128
      %p130 = scmp.eq.s32.totalorder %s20, 0
      %p131 = por %p129, %p130
      %s133 = sadd.s32 %s132, 1
      %p136 = scmp.eq.s32.totalorder %s14, 1
      %p137 = scmp.ne.s32.totalorder %s132, %s134
      %p138 = scmp.eq.s32.totalorder %s14, 0
      %p139 = por %p137, %p138
      %p140 = scmp.ne.s32.totalorder %s132, %s134
      %p141 = scmp.eq.s32.totalorder %s19, 1
      %p142 = por %p140, %p141
      %p143 = scmp.ne.s32.totalorder %s134, %s135
      %p144 = scmp.eq.s32.totalorder %s19, 0
      %p145 = por %p143, %p144
      %p146 = scmp.ne.s32.totalorder %s134, %s135
      %p147 = scmp.eq.s32.totalorder %s20, 1
      %p148 = por %p146, %p147
      %p150 = scmp.ne.s32.totalorder %s135, %s149
      %p151 = scmp.eq.s32.totalorder %s20, 0
      %p152 = por %p150, %p151
      %s154 = sadd.s32 %s153, 1
      %p157 = scmp.eq.s32.totalorder %s14, 1
      %p158 = scmp.ne.s32.totalorder %s153, %s155
      %p159 = scmp.eq.s32.totalorder %s14, 0
      %p160 = por %p158, %p159
      %p161 = scmp.ne.s32.totalorder %s153, %s155
      %p162 = scmp.eq.s32.totalorder %s19, 1
      %p163 = por %p161, %p162
      %p164 = scmp.ne.s32.totalorder %s155, %s156
      %p165 = scmp.eq.s32.totalorder %s19, 0
      %p166 = por %p164, %p165
      %p167 = scmp.ne.s32.totalorder %s155, %s156
      %p168 = scmp.eq.s32.totalorder %s20, 1
      %p169 = por %p167, %p168
      %p171 = scmp.ne.s32.totalorder %s156, %s170
      %p172 = scmp.eq.s32.totalorder %s20, 0
      %p173 = por %p171, %p172
      %s174 = ssub.s32 %s14, %s21
      %p175 = scmp.eq.s32.totalorder %s174, 0
      %s177 = sadd.s32 %s176, 1
      %s178 = scalar_select %p175, %s176, %s177
      %p181 = pneg %p175
      %p182 = scmp.eq.s32.totalorder %s14, 1
      %p183 = por %p181, %p182
      %p184 = scmp.ne.s32.totalorder %s176, %s179
      %p185 = scmp.eq.s32.totalorder %s14, 0
      %p186 = por %p184, %p185
      %p187 = scmp.ne.s32.totalorder %s176, %s179
      %p188 = scmp.eq.s32.totalorder %s19, 1
      %p189 = por %p187, %p188
      %p190 = scmp.ne.s32.totalorder %s179, %s180
      %p191 = scmp.eq.s32.totalorder %s19, 0
      %p192 = por %p190, %p191
      %p193 = scmp.ne.s32.totalorder %s179, %s180
      %p194 = scmp.eq.s32.totalorder %s20, 1
      %p195 = por %p193, %p194
      %p197 = scmp.ne.s32.totalorder %s180, %s196
      %p198 = scmp.eq.s32.totalorder %s20, 0
      %p199 = por %p197, %p198
      %p200 = scmp.le.s32.totalorder 1, %s14
      %p201 = scmp.lt.s32.totalorder %s14, 3
      %p202 = pnand %p200, %p201
      %p203 = pneg %p202
      // Predicated region
      $region9: #{_forward_impl.1} parent=5 // pred_check
        _
      $region10: #{_forward_impl.1} parent=5 // pred_check_branch
        %205 = sbr.rel (%p202) target = $region12
      $region11: #{_forward_impl.1} parent=5 // pred_region
        %s206 = ssub.s32 %s14, 1
        // Predicated region
        $region13: #{_forward_impl.1} parent=11 // pred_check
          %p207 = pneg %p61
        $region14: #{_forward_impl.1} parent=11 // pred_check_branch
          %209 = sbr.rel (%p207) target = $region16
        $region15: #{_forward_impl.1} parent=11 // pred_region
          _
        $region16: #{_forward_impl.1} parent=11 // pred_fallthru
          _
        // Predicated region
        $region17: #{_forward_impl.1} parent=11 // pred_check
          %p210 = pneg %p82
        $region18: #{_forward_impl.1} parent=11 // pred_check_branch
          %212 = sbr.rel (%p210) target = $region20
        $region19: #{_forward_impl.1} parent=11 // pred_region
          _
        $region20: #{_forward_impl.1} parent=11 // pred_fallthru
          _
        // Predicated region
        $region21: #{_forward_impl.1} parent=11 // pred_check
          %p213 = pneg %p103
        $region22: #{_forward_impl.1} parent=11 // pred_check_branch
          %215 = sbr.rel (%p213) target = $region24
        $region23: #{_forward_impl.1} parent=11 // pred_region
          %s217 = ssub.s32 512, 512
          %218 = vsyncadd [#allocation3], %s217
          %s219 = sshll.u32 [#allocation2], 4
          %s220 = int_to_ptr.vmem [resolvable:$true] %s219
          %225 = dma.hbm_to_vmem [thread:$0]  %s3, 512, %s220, [#allocation3], 128, 128, 8
        $region24: #{_forward_impl.1} parent=11 // pred_fallthru
          _
        // Predicated region
        $region25: #{_forward_impl.1} parent=11 // pred_check
          %p226 = pneg %p124
        $region26: #{_forward_impl.1} parent=11 // pred_check_branch
          %228 = sbr.rel (%p226) target = $region28
        $region27: #{_forward_impl.1} parent=11 // pred_region
          _
        $region28: #{_forward_impl.1} parent=11 // pred_fallthru
          _
        // Predicated region
        $region29: #{_forward_impl.1} parent=11 // pred_check
          %p229 = pneg %p145
        $region30: #{_forward_impl.1} parent=11 // pred_check_branch
          %231 = sbr.rel (%p229) target = $region32
        $region31: #{_forward_impl.1} parent=11 // pred_region
          _
        $region32: #{_forward_impl.1} parent=11 // pred_fallthru
          _
        // Predicated region
        $region33: #{_forward_impl.1} parent=11 // pred_check
          %p232 = pneg %p166
        $region34: #{_forward_impl.1} parent=11 // pred_check_branch
          %234 = sbr.rel (%p232) target = $region36
        $region35: #{_forward_impl.1} parent=11 // pred_region
          _
        $region36: #{_forward_impl.1} parent=11 // pred_fallthru
          _
      $region12: #{_forward_impl.1} parent=5 // pred_fallthru
        _
      %p235 = scmp.lt.s32.totalorder %s14, 2
      // Predicated region
      $region37: #{_forward_impl.1} parent=5 // pred_check
        %p236 = pneg %p235
      $region38: #{_forward_impl.1} parent=5 // pred_check_branch
        %238 = sbr.rel (%p236) target = $region40
      $region39: #{_forward_impl.1} parent=5 // pred_region
        // Predicated region
        $region41: #{_forward_impl.1} parent=39 // pred_check
          %p239 = pneg %p34
        $region42: #{_forward_impl.1} parent=39 // pred_check_branch
          %241 = sbr.rel (%p239) target = $region44
        $region43: #{_forward_impl.1} parent=39 // pred_region
          %p242 = scmp.lt.s32.totalorder %s14, 1
          %s243 = scalar_select %p242, %s14, 1
          %s244 = smul.addr %s243, 2
          %s245 = smul.addr %s244, 4
          %s246 = scalar_lea.vmem %s0, %s245
        $region44: #{_forward_impl.1} parent=39 // pred_fallthru
          _
      $region40: #{_forward_impl.1} parent=5 // pred_fallthru
        _
      %p247 = scmp.le.s32.totalorder 1, %s14
      %p248 = scmp.lt.s32.totalorder %s14, 3
      %p249 = pnand %p247, %p248
      %p250 = pneg %p249
      // Predicated region
      $region45: #{_forward_impl.1} parent=5 // pred_check
        _
      $region46: #{_forward_impl.1} parent=5 // pred_check_branch
        %252 = sbr.rel (%p249) target = $region48
      $region47: #{_forward_impl.1} parent=5 // pred_region
        %s253 = ssub.s32 %s14, 1
        // Predicated region
        $region49: #{_forward_impl.1} parent=47 // pred_check
          %p254 = pneg %p103
        $region50: #{_forward_impl.1} parent=47 // pred_check_branch
          %256 = sbr.rel (%p254) target = $region52
        $region51: #{_forward_impl.1} parent=47 // pred_region
          %257 = dma.done [#allocation3], 512
        $region52: #{_forward_impl.1} parent=47 // pred_fallthru
          _
        %p258 = scmp.lt.s32.totalorder %s19, 1
        %s259 = scalar_select %p258, %s19, 1
        %s260 = smul.addr %s259, 2
        %s261 = smul.addr %s260, 4
        %s262 = scalar_lea.vmem %s0, %s261
        %p263 = pneg %p40
        %p264 = pneg %p37
        %p265 = pneg %p61
        %p266 = pneg %p58
        %p267 = pneg %p82
        %p268 = pneg %p79
        %p269 = pneg %p103
        %p270 = pneg %p100
        %p271 = pneg %p124
        %p272 = pneg %p121
        %p273 = pneg %p145
        %p274 = pneg %p142
        %p275 = pneg %p166
        %p276 = pneg %p163
        %p277 = pneg %p192
        %p278 = pneg %p189
        %p279 = scmp.lt.s32.totalorder %s19, 1
        %s280 = scalar_select %p279, %s19, 1
        %s281 = smul.addr %s280, 2
        %s282 = smul.addr %s281, 8
        %s283 = scalar_lea.vmem %s7, %s282
        %p284 = scmp.lt.s32.totalorder %s19, 1
        %s285 = scalar_select %p284, %s19, 1
        %s286 = smul.addr %s285, 2
        %s287 = smul.addr %s286, 4
        %s288 = scalar_lea.vmem %s0, %s287
        %p289 = scmp.lt.s32.totalorder %s19, 1
        %s290 = scalar_select %p289, %s19, 1
        %s291 = smul.addr %s290, 2
        %s292 = smul.addr %s291, 8
        %s293 = scalar_lea.vmem %s7, %s292
        %v295 = vld [vmem:[%s288] sm:$0xf]
        %v296 = vld [vmem:[%s288 + $0x4] sm:$0xf]
        %v297 = vld [vmem:[%s1] sm:$0xf]
        %v298 = vld [vmem:[%s1 + $0x4] sm:$0xf]
        %v299 = vld [vmem:[%s1 + $0x8] sm:$0xf]
        %v300 = vld [vmem:[%s1 + $0xc] sm:$0xf]
        %v301 = vld [vmem:[%s1 + $0x10] sm:$0xf]
        %v302 = vld [vmem:[%s1 + $0x14] sm:$0xf]
        %v309 = vunpack.c.l.b16 %v297
        %v310 = vunpack.c.l.b16 %v298
        %v311 = vunpack.c.l.b16 %v299
        %v312 = vunpack.c.l.b16 %v300
        %v313 = vunpack.c.l.b16 %v301
        %v314 = vunpack.c.l.b16 %v302
        %v315 = vpack.c.b16 %v310, %v309
        %v316 = vpack.c.b16 %v312, %v311
        %v317 = vpack.c.b16 %v314, %v313
        %v320 = vunpack.c.l.b16 %v295
        %v321 = vunpack.c.l.b16 %v296
        %v322 = vpack.c.b16 %v321, %v320
        %vm324 = vcmask 130048
        %v326 = vsel %vm324, %v315, 0
        %v329 = vsel %vm324, %v316, 0
        %v332 = vsel %vm324, %v317, 0
        %334 = vmatprep.subr.bf16.mxu0 0
        %335 = vmatpush1.bf16.msra.mxu0 %v322
        %336 = vmatprep.subr.bf16.mxu0 0
        %337 = vmatpush1.bf16.msra.mxu0 0
        %338 = vmatprep.subr.bf16.mxu0 0
        %339 = vmatpush1.bf16.msra.mxu0 0
        %340 = vmatprep.subr.bf16.mxu0 0
        %341 = vmatpush1.bf16.msra.mxu0 0
        %342 = vmatprep.subr.bf16.mxu0 0
        %343 = vmatpush1.bf16.msra.mxu0 0
        %344 = vmatprep.subr.bf16.mxu0 0
        %345 = vmatpush1.bf16.msra.mxu0 0
        %346 = vmatprep.subr.bf16.mxu0 0
        %347 = vmatpush1.bf16.msra.mxu0 0
        %348 = vmatprep.subr.bf16.mxu0 0
        %349 = vmatpush1.bf16.msra.mxu0 0
        %350 = vmatprep.subr.bf16.mxu0 0
        %351 = vmatpush1.bf16.msra.mxu0 0
        %352 = vmatprep.subr.bf16.mxu0 0
        %353 = vmatpush1.bf16.msra.mxu0 0
        %354 = vmatprep.subr.bf16.mxu0 0
        %355 = vmatpush1.bf16.msra.mxu0 0
        %356 = vmatprep.subr.bf16.mxu0 0
        %357 = vmatpush1.bf16.msra.mxu0 0
        %358 = vmatprep.subr.bf16.mxu0 0
        %359 = vmatpush1.bf16.msra.mxu0 0
        %360 = vmatprep.subr.bf16.mxu0 0
        %361 = vmatpush1.bf16.msra.mxu0 0
        %362 = vmatprep.subr.bf16.mxu0 0
        %363 = vmatpush1.bf16.msra.mxu0 0
        %364 = vmatprep.subr.bf16.mxu0 0
        %365 = vmatpush1.bf16.msra.mxu0 0
        %366 = vmatprep.mubr.bf16.mxu0 0
        %367 = vmatmul.mubr.bf16.gmra.mrb[0].mxu0 %v326
        %v368 = vpop.f32.mrb[0].mxu0
        %v369 = vadd.f32 0.0, %v368
        %v370 = vpop.f32.mrb[0].mxu0
        %v371 = vpop.f32.mrb[0].mxu0
        %v372 = vadd.f32 0.0, %v371
        %v373 = vpop.f32.mrb[0].mxu0
        %374 = vmatprep.mubr.bf16.mxu0 0
        %375 = vmatmul.mubr.bf16.gmra.mrb[0].mxu0 %v329
        %v376 = vpop.f32.mrb[0].mxu0
        %v377 = vadd.f32 0.0, %v376
        %v378 = vpop.f32.mrb[0].mxu0
        %v379 = vpop.f32.mrb[0].mxu0
        %v380 = vadd.f32 0.0, %v379
        %v381 = vpop.f32.mrb[0].mxu0
        %382 = vmatprep.mubr.bf16.mxu0 0
        %383 = vmatmul.mubr.bf16.gmra.mrb[0].mxu0 %v332
        %v384 = vpop.f32.mrb[0].mxu0
        %v385 = vadd.f32 0.0, %v384
        %v386 = vpop.f32.mrb[0].mxu0
        %v387 = vpop.f32.mrb[0].mxu0
        %v388 = vadd.f32 0.0, %v387
        %v389 = vpop.f32.mrb[0].mxu0
        %390 = vdwg.mxu0
        %v391 = vpack.c.bf16 %v372, %v369
        %v392 = vpack.c.bf16 %v380, %v377
        %v393 = vpack.c.bf16 %v388, %v385
        %v394 = vld [vmem:[%s2] sm:$0xf]
        %v395 = vld [vmem:[%s2 + $0x4] sm:$0xf]
        %v396 = vld [vmem:[%s2 + $0x8] sm:$0xf]
        %v397 = vld [vmem:[%s2 + $0xc] sm:$0xf]
        %s398 = scalar_lea.vmem %s2, 16
        %v399 = vld [vmem:[%s398] sm:$0xf]
        %v400 = vld [vmem:[%s398 + $0x4] sm:$0xf]
        %v401 = vld [vmem:[%s398 + $0x8] sm:$0xf]
        %v402 = vld [vmem:[%s398 + $0xc] sm:$0xf]
        %v407 = vunpack.c.l.b16 %v399
        %v408 = vunpack.c.l.b16 %v400
        %v409 = vunpack.c.l.b16 %v401
        %v410 = vunpack.c.l.b16 %v402
        %v411 = vpack.c.b16 %v408, %v407
        %v412 = vpack.c.b16 %v410, %v409
        %vm415 = vcmask 261120
        %v417 = vsel %vm415, %v392, 0
        %419 = vmatprep.subr.bf16.mxu0 0
        %420 = vmatpush1.bf16.msra.mxu0 %v411
        %421 = vmatprep.subr.bf16.mxu0 0
        %422 = vmatpush1.bf16.msra.mxu0 %v412
        %423 = vmatprep.subr.bf16.mxu0 0
        %424 = vmatpush1.bf16.msra.mxu0 0
        %425 = vmatprep.subr.bf16.mxu0 0
        %426 = vmatpush1.bf16.msra.mxu0 0
        %427 = vmatprep.subr.bf16.mxu0 0
        %428 = vmatpush1.bf16.msra.mxu0 0
        %429 = vmatprep.subr.bf16.mxu0 0
        %430 = vmatpush1.bf16.msra.mxu0 0
        %431 = vmatprep.subr.bf16.mxu0 0
        %432 = vmatpush1.bf16.msra.mxu0 0
        %433 = vmatprep.subr.bf16.mxu0 0
        %434 = vmatpush1.bf16.msra.mxu0 0
        %435 = vmatprep.subr.bf16.mxu0 0
        %436 = vmatpush1.bf16.msra.mxu0 0
        %437 = vmatprep.subr.bf16.mxu0 0
        %438 = vmatpush1.bf16.msra.mxu0 0
        %439 = vmatprep.subr.bf16.mxu0 0
        %440 = vmatpush1.bf16.msra.mxu0 0
        %441 = vmatprep.subr.bf16.mxu0 0
        %442 = vmatpush1.bf16.msra.mxu0 0
        %443 = vmatprep.subr.bf16.mxu0 0
        %444 = vmatpush1.bf16.msra.mxu0 0
        %445 = vmatprep.subr.bf16.mxu0 0
        %446 = vmatpush1.bf16.msra.mxu0 0
        %447 = vmatprep.subr.bf16.mxu0 0
        %448 = vmatpush1.bf16.msra.mxu0 0
        %449 = vmatprep.subr.bf16.mxu0 0
        %450 = vmatpush1.bf16.msra.mxu0 0
        %451 = vmatprep.mubr.bf16.mxu0 0
        %452 = vmatmul.mubr.bf16.gmra.mrb[0].mxu0 %v417
        %v453 = vpop.f32.mrb[0].mxu0
        %v454 = vadd.f32 0.0, %v453
        %v455 = vpop.f32.mrb[0].mxu0
        %v456 = vpop.f32.mrb[0].mxu0
        %v457 = vadd.f32 0.0, %v456
        %v458 = vpop.f32.mrb[0].mxu0
        %459 = vdwg.mxu0
        %v464 = vunpack.c.l.b16 %v394
        %v465 = vunpack.c.l.b16 %v395
        %v466 = vunpack.c.l.b16 %v396
        %v467 = vunpack.c.l.b16 %v397
        %v468 = vpack.c.b16 %v465, %v464
        %v469 = vpack.c.b16 %v467, %v466
        %v473 = vsel %vm415, %v391, 0
        %475 = vmatprep.subr.bf16.mxu0 0
        %476 = vmatpush1.bf16.msra.mxu0 %v468
        %477 = vmatprep.subr.bf16.mxu0 0
        %478 = vmatpush1.bf16.msra.mxu0 %v469
        %479 = vmatprep.subr.bf16.mxu0 0
        %480 = vmatpush1.bf16.msra.mxu0 0
        %481 = vmatprep.subr.bf16.mxu0 0
        %482 = vmatpush1.bf16.msra.mxu0 0
        %483 = vmatprep.subr.bf16.mxu0 0
        %484 = vmatpush1.bf16.msra.mxu0 0
        %485 = vmatprep.subr.bf16.mxu0 0
        %486 = vmatpush1.bf16.msra.mxu0 0
        %487 = vmatprep.subr.bf16.mxu0 0
        %488 = vmatpush1.bf16.msra.mxu0 0
        %489 = vmatprep.subr.bf16.mxu0 0
        %490 = vmatpush1.bf16.msra.mxu0 0
        %491 = vmatprep.subr.bf16.mxu0 0
        %492 = vmatpush1.bf16.msra.mxu0 0
        %493 = vmatprep.subr.bf16.mxu0 0
        %494 = vmatpush1.bf16.msra.mxu0 0
        %495 = vmatprep.subr.bf16.mxu0 0
        %496 = vmatpush1.bf16.msra.mxu0 0
        %497 = vmatprep.subr.bf16.mxu0 0
        %498 = vmatpush1.bf16.msra.mxu0 0
        %499 = vmatprep.subr.bf16.mxu0 0
        %500 = vmatpush1.bf16.msra.mxu0 0
        %501 = vmatprep.subr.bf16.mxu0 0
        %502 = vmatpush1.bf16.msra.mxu0 0
        %503 = vmatprep.subr.bf16.mxu0 0
        %504 = vmatpush1.bf16.msra.mxu0 0
        %505 = vmatprep.subr.bf16.mxu0 0
        %506 = vmatpush1.bf16.msra.mxu0 0
        %507 = vmatprep.mubr.bf16.mxu0 0
        %508 = vmatmul.mubr.bf16.gmra.mrb[0].mxu0 %v473
        %v509 = vpop.f32.mrb[0].mxu0
        %v510 = vadd.f32 %v454, %v509
        %v511 = vpop.f32.mrb[0].mxu0
        %v512 = vpop.f32.mrb[0].mxu0
        %v513 = vadd.f32 %v457, %v512
        %v514 = vpop.f32.mrb[0].mxu0
        %515 = vdwg.mxu0
        %s516 = scalar_lea.vmem %s2, 32
        %v517 = vld [vmem:[%s516] sm:$0xf]
        %v518 = vld [vmem:[%s516 + $0x4] sm:$0xf]
        %v519 = vld [vmem:[%s516 + $0x8] sm:$0xf]
        %v520 = vld [vmem:[%s516 + $0xc] sm:$0xf]
        %v525 = vunpack.c.l.b16 %v517
        %v526 = vunpack.c.l.b16 %v518
        %v527 = vunpack.c.l.b16 %v519
        %v528 = vunpack.c.l.b16 %v520
        %v529 = vpack.c.b16 %v526, %v525
        %v530 = vpack.c.b16 %v528, %v527
        %v534 = vsel %vm415, %v393, 0
        %536 = vmatprep.subr.bf16.mxu0 0
        %537 = vmatpush1.bf16.msra.mxu0 %v529
        %538 = vmatprep.subr.bf16.mxu0 0
        %539 = vmatpush1.bf16.msra.mxu0 %v530
        %540 = vmatprep.subr.bf16.mxu0 0
        %541 = vmatpush1.bf16.msra.mxu0 0
        %542 = vmatprep.subr.bf16.mxu0 0
        %543 = vmatpush1.bf16.msra.mxu0 0
        %544 = vmatprep.subr.bf16.mxu0 0
        %545 = vmatpush1.bf16.msra.mxu0 0
        %546 = vmatprep.subr.bf16.mxu0 0
        %547 = vmatpush1.bf16.msra.mxu0 0
        %548 = vmatprep.subr.bf16.mxu0 0
        %549 = vmatpush1.bf16.msra.mxu0 0
        %550 = vmatprep.subr.bf16.mxu0 0
        %551 = vmatpush1.bf16.msra.mxu0 0
        %552 = vmatprep.subr.bf16.mxu0 0
        %553 = vmatpush1.bf16.msra.mxu0 0
        %554 = vmatprep.subr.bf16.mxu0 0
        %555 = vmatpush1.bf16.msra.mxu0 0
        %556 = vmatprep.subr.bf16.mxu0 0
        %557 = vmatpush1.bf16.msra.mxu0 0
        %558 = vmatprep.subr.bf16.mxu0 0
        %559 = vmatpush1.bf16.msra.mxu0 0
        %560 = vmatprep.subr.bf16.mxu0 0
        %561 = vmatpush1.bf16.msra.mxu0 0
        %562 = vmatprep.subr.bf16.mxu0 0
        %563 = vmatpush1.bf16.msra.mxu0 0
        %564 = vmatprep.subr.bf16.mxu0 0
        %565 = vmatpush1.bf16.msra.mxu0 0
        %566 = vmatprep.subr.bf16.mxu0 0
        %567 = vmatpush1.bf16.msra.mxu0 0
        %568 = vmatprep.mubr.bf16.mxu0 0
        %569 = vmatmul.mubr.bf16.gmra.mrb[0].mxu0 %v534
        %v570 = vpop.f32.mrb[0].mxu0
        %v571 = vadd.f32 0.0, %v570
        %v572 = vpop.f32.mrb[0].mxu0
        %v573 = vpop.f32.mrb[0].mxu0
        %v574 = vadd.f32 0.0, %v573
        %v575 = vpop.f32.mrb[0].mxu0
        %576 = vdwg.mxu0
        %v577 = vadd.f32 %v510, %v571
        %v578 = vadd.f32 %v513, %v574
        %v579 = vmax.f32 %v577, 0.0
        %v580 = vmax.f32 %v578, 0.0
        %v581 = vpack.c.bf16 %v580, %v579
        %v582 = vld [vmem:[#allocation2] sm:$0xff]
        %v583 = vld [vmem:[#allocation2 + $0x8] sm:$0xff]
        %v584 = vld [vmem:[#allocation2 + $0x10] sm:$0xff]
        %v585 = vld [vmem:[#allocation2 + $0x18] sm:$0xff]
        %v586 = vld [vmem:[%s4] sm:$0x3]
        %v588 = vlaneseq
        %v589 = vshrl.u32 %v588, 7
        %v590 = vsub.s32 0, %v589
        %v591 = vrot.slane %v586, %v590
        %v592 = vlaneseq
        %v593 = vshrl.u32 %v592, 7
        %v594 = vsub.s32 1, %v593
        %v595 = vrot.slane %v586, %v594
        %v602 = vunpack.c.l.b16 %v582
        %v603 = vunpack.c.h.b16 %v582
        %v604 = vunpack.c.l.b16 %v583
        %v605 = vunpack.c.h.b16 %v583
        %v606 = vunpack.c.l.b16 %v584
        %v607 = vunpack.c.h.b16 %v584
        %v608 = vunpack.c.l.b16 %v585
        %v609 = vunpack.c.h.b16 %v585
        %v610 = vpack.c.b16 %v604, %v602
        %v611 = vpack.c.b16 %v605, %v603
        %v612 = vpack.c.b16 %v608, %v606
        %v613 = vpack.c.b16 %v609, %v607
        %v619 = vsel %vm415, %v581, 0
        %621 = vmatprep.subr.bf16.mxu0 %v611
        %622 = vmatpush1.bf16.msra.mxu0 %v610
        %623 = vmatprep.subr.bf16.mxu0 %v613
        %624 = vmatpush1.bf16.msra.mxu0 %v612
        %625 = vmatprep.subr.bf16.mxu0 0
        %626 = vmatpush1.bf16.msra.mxu0 0
        %627 = vmatprep.subr.bf16.mxu0 0
        %628 = vmatpush1.bf16.msra.mxu0 0
        %629 = vmatprep.subr.bf16.mxu0 0
        %630 = vmatpush1.bf16.msra.mxu0 0
        %631 = vmatprep.subr.bf16.mxu0 0
        %632 = vmatpush1.bf16.msra.mxu0 0
        %633 = vmatprep.subr.bf16.mxu0 0
        %634 = vmatpush1.bf16.msra.mxu0 0
        %635 = vmatprep.subr.bf16.mxu0 0
        %636 = vmatpush1.bf16.msra.mxu0 0
        %637 = vmatprep.subr.bf16.mxu0 0
        %638 = vmatpush1.bf16.msra.mxu0 0
        %639 = vmatprep.subr.bf16.mxu0 0
        %640 = vmatpush1.bf16.msra.mxu0 0
        %641 = vmatprep.subr.bf16.mxu0 0
        %642 = vmatpush1.bf16.msra.mxu0 0
        %643 = vmatprep.subr.bf16.mxu0 0
        %644 = vmatpush1.bf16.msra.mxu0 0
        %645 = vmatprep.subr.bf16.mxu0 0
        %646 = vmatpush1.bf16.msra.mxu0 0
        %647 = vmatprep.subr.bf16.mxu0 0
        %648 = vmatpush1.bf16.msra.mxu0 0
        %649 = vmatprep.subr.bf16.mxu0 0
        %650 = vmatpush1.bf16.msra.mxu0 0
        %651 = vmatprep.subr.bf16.mxu0 0
        %652 = vmatpush1.bf16.msra.mxu0 0
        %653 = vmatprep.mubr.bf16.mxu0 0
        %654 = vmatmul.mubr.bf16.gmra.mrb[0].mxu0 %v619
        %v655 = vpop.f32.mrb[0].mxu0
        %v656 = vadd.f32 %v591, %v655
        %v657 = vpop.f32.mrb[0].mxu0
        %v658 = vadd.f32 %v595, %v657
        %v659 = vpop.f32.mrb[0].mxu0
        %v660 = vadd.f32 %v591, %v659
        %v661 = vpop.f32.mrb[0].mxu0
        %v662 = vadd.f32 %v595, %v661
        %663 = vdwg.mxu0
        %v664 = vmax.f32 %v656, 0.0
        %v665 = vmax.f32 %v658, 0.0
        %v666 = vmax.f32 %v660, 0.0
        %v667 = vmax.f32 %v662, 0.0
        %v668 = vpack.c.bf16 %v666, %v664
        %v669 = vpack.c.bf16 %v667, %v665
        %v670 = vld [vmem:[%s5] sm:$0xf]
        %v671 = vld [vmem:[%s5 + $0x4] sm:$0xf]
        %v672 = vld [vmem:[%s5 + $0x8] sm:$0xf]
        %v673 = vld [vmem:[%s5 + $0xc] sm:$0xf]
        %v674 = vld [vmem:[%s5 + $0x10] sm:$0xf]
        %v675 = vld [vmem:[%s5 + $0x14] sm:$0xf]
        %v676 = vld [vmem:[%s5 + $0x18] sm:$0xf]
        %v677 = vld [vmem:[%s5 + $0x1c] sm:$0xf]
        %v678 = vld [vmem:[%s5 + $0x20] sm:$0xf]
        %v679 = vld [vmem:[%s5 + $0x24] sm:$0xf]
        %v680 = vld [vmem:[%s5 + $0x28] sm:$0xf]
        %v681 = vld [vmem:[%s5 + $0x2c] sm:$0xf]
        %v682 = vld [vmem:[%s5 + $0x30] sm:$0xf]
        %v683 = vld [vmem:[%s5 + $0x34] sm:$0xf]
        %v684 = vld [vmem:[%s5 + $0x38] sm:$0xf]
        %v685 = vld [vmem:[%s5 + $0x3c] sm:$0xf]
        %v686 = vld [vmem:[%s5 + $0x40] sm:$0xf]
        %v687 = vld [vmem:[%s5 + $0x44] sm:$0xf]
        %v688 = vld [vmem:[%s5 + $0x48] sm:$0xf]
        %v689 = vld [vmem:[%s5 + $0x4c] sm:$0xf]
        %v690 = vld [vmem:[%s5 + $0x50] sm:$0xf]
        %v691 = vld [vmem:[%s5 + $0x54] sm:$0xf]
        %v692 = vld [vmem:[%s5 + $0x58] sm:$0xf]
        %v693 = vld [vmem:[%s5 + $0x5c] sm:$0xf]
        %v694 = vld [vmem:[%s5 + $0x60] sm:$0xf]
        %v695 = vld [vmem:[%s5 + $0x64] sm:$0xf]
        %v696 = vld [vmem:[%s5 + $0x68] sm:$0xf]
        %v697 = vld [vmem:[%s5 + $0x6c] sm:$0xf]
        %v698 = vld [vmem:[%s5 + $0x70] sm:$0xf]
        %v699 = vld [vmem:[%s5 + $0x74] sm:$0xf]
        %v700 = vld [vmem:[%s5 + $0x78] sm:$0xf]
        %v701 = vld [vmem:[%s5 + $0x7c] sm:$0xf]
        %v702 = vld [vmem:[%s6] sm:$0x1]
        %v704 = vlaneseq
        %v705 = vshrl.u32 %v704, 7
        %v706 = vsub.s32 0, %v705
        %v707 = vrot.slane %v702, %v706
        %v741 = vunpack.c.l.b16 %v670
        %v742 = vunpack.c.l.b16 %v671
        %v743 = vunpack.c.l.b16 %v672
        %v744 = vunpack.c.l.b16 %v673
        %v745 = vunpack.c.l.b16 %v674
        %v746 = vunpack.c.l.b16 %v675
        %v747 = vunpack.c.l.b16 %v676
        %v748 = vunpack.c.l.b16 %v677
        %v749 = vunpack.c.l.b16 %v678
        %v750 = vunpack.c.l.b16 %v679
        %v751 = vunpack.c.l.b16 %v680
        %v752 = vunpack.c.l.b16 %v681
        %v753 = vunpack.c.l.b16 %v682
        %v754 = vunpack.c.l.b16 %v683
        %v755 = vunpack.c.l.b16 %v684
        %v756 = vunpack.c.l.b16 %v685
        %v757 = vunpack.c.l.b16 %v686
        %v758 = vunpack.c.l.b16 %v687
        %v759 = vunpack.c.l.b16 %v688
        %v760 = vunpack.c.l.b16 %v689
        %v761 = vunpack.c.l.b16 %v690
        %v762 = vunpack.c.l.b16 %v691
        %v763 = vunpack.c.l.b16 %v692
        %v764 = vunpack.c.l.b16 %v693
        %v765 = vunpack.c.l.b16 %v694
        %v766 = vunpack.c.l.b16 %v695
        %v767 = vunpack.c.l.b16 %v696
        %v768 = vunpack.c.l.b16 %v697
        %v769 = vunpack.c.l.b16 %v698
        %v770 = vunpack.c.l.b16 %v699
        %v771 = vunpack.c.l.b16 %v700
        %v772 = vunpack.c.l.b16 %v701
        %v773 = vpack.c.b16 %v742, %v741
        %v774 = vpack.c.b16 %v744, %v743
        %v775 = vpack.c.b16 %v746, %v745
        %v776 = vpack.c.b16 %v748, %v747
        %v777 = vpack.c.b16 %v750, %v749
        %v778 = vpack.c.b16 %v752, %v751
        %v779 = vpack.c.b16 %v754, %v753
        %v780 = vpack.c.b16 %v756, %v755
        %v781 = vpack.c.b16 %v758, %v757
        %v782 = vpack.c.b16 %v760, %v759
        %v783 = vpack.c.b16 %v762, %v761
        %v784 = vpack.c.b16 %v764, %v763
        %v785 = vpack.c.b16 %v766, %v765
        %v786 = vpack.c.b16 %v768, %v767
        %v787 = vpack.c.b16 %v770, %v769
        %v788 = vpack.c.b16 %v772, %v771
        %805 = vmatprep.subr.bf16.mxu0 0
        %806 = vmatpush1.bf16.msra.mxu0 %v773
        %807 = vmatprep.subr.bf16.mxu0 0
        %808 = vmatpush1.bf16.msra.mxu0 %v774
        %809 = vmatprep.subr.bf16.mxu0 0
        %810 = vmatpush1.bf16.msra.mxu0 %v775
        %811 = vmatprep.subr.bf16.mxu0 0
        %812 = vmatpush1.bf16.msra.mxu0 %v776
        %813 = vmatprep.subr.bf16.mxu0 0
        %814 = vmatpush1.bf16.msra.mxu0 %v777
        %815 = vmatprep.subr.bf16.mxu0 0
        %816 = vmatpush1.bf16.msra.mxu0 %v778
        %817 = vmatprep.subr.bf16.mxu0 0
        %818 = vmatpush1.bf16.msra.mxu0 %v779
        %819 = vmatprep.subr.bf16.mxu0 0
        %820 = vmatpush1.bf16.msra.mxu0 %v780
        %821 = vmatprep.subr.bf16.mxu0 0
        %822 = vmatpush1.bf16.msra.mxu0 %v781
        %823 = vmatprep.subr.bf16.mxu0 0
        %824 = vmatpush1.bf16.msra.mxu0 %v782
        %825 = vmatprep.subr.bf16.mxu0 0
        %826 = vmatpush1.bf16.msra.mxu0 %v783
        %827 = vmatprep.subr.bf16.mxu0 0
        %828 = vmatpush1.bf16.msra.mxu0 %v784
        %829 = vmatprep.subr.bf16.mxu0 0
        %830 = vmatpush1.bf16.msra.mxu0 %v785
        %831 = vmatprep.subr.bf16.mxu0 0
        %832 = vmatpush1.bf16.msra.mxu0 %v786
        %833 = vmatprep.subr.bf16.mxu0 0
        %834 = vmatpush1.bf16.msra.mxu0 %v787
        %835 = vmatprep.subr.bf16.mxu0 0
        %836 = vmatpush1.bf16.msra.mxu0 %v788
        %837 = vmatprep.mubr.bf16.mxu0 %v669
        %838 = vmatmul.mubr.bf16.gmra.mrb[0].mxu0 %v668
        %v839 = vpop.f32.mrb[0].mxu0
        %v840 = vadd.f32 %v707, %v839
        %v841 = vpop.f32.mrb[0].mxu0
        %v842 = vpop.f32.mrb[0].mxu0
        %v843 = vadd.f32 %v707, %v842
        %v844 = vpop.f32.mrb[0].mxu0
        %845 = vdwg.mxu0
        %846 = vst [vmem:[%s293] sm:$0xff] %v840
        %847 = vst [vmem:[%s293 + $0x8] sm:$0xff] %v843
        %p848 = scmp.lt.s32.totalorder %s19, 1
        %s849 = scalar_select %p848, %s19, 1
        %s850 = smul.addr %s849, 2
        %s851 = smul.addr %s850, 8
        %s852 = scalar_lea.vmem %s7, %s851
        // Predicated region
        $region53: #{_forward_impl.1} parent=47 // pred_check
          %p853 = pneg %p189
        $region54: #{_forward_impl.1} parent=47 // pred_check_branch
          %855 = sbr.rel (%p853) target = $region56
        $region55: #{_forward_impl.1} parent=47 // pred_region
          _
        $region56: #{_forward_impl.1} parent=47 // pred_fallthru
          _
      $region48: #{_forward_impl.1} parent=5 // pred_fallthru
        _
      %p856 = scmp.le.s32.totalorder 2, %s14
      // Predicated region
      $region57: #{_forward_impl.1} parent=5 // pred_check
        %p857 = pneg %p856
      $region58: #{_forward_impl.1} parent=5 // pred_check_branch
        %859 = sbr.rel (%p857) target = $region60
      $region59: #{_forward_impl.1} parent=5 // pred_region
        %s860 = ssub.s32 %s14, 2
        // Predicated region
        $region61: #{_forward_impl.1} parent=59 // pred_check
          %p861 = pneg %p195
        $region62: #{_forward_impl.1} parent=59 // pred_check_branch
          %863 = sbr.rel (%p861) target = $region64
        $region63: #{_forward_impl.1} parent=59 // pred_region
          %p864 = scmp.lt.s32.totalorder %s20, 1
          %s865 = scalar_select %p864, %s20, 1
          %s866 = smul.addr %s865, 2
          %s867 = smul.addr %s866, 8
          %s868 = scalar_lea.vmem %s7, %s867
        $region64: #{_forward_impl.1} parent=59 // pred_fallthru
          _
      $region60: #{_forward_impl.1} parent=5 // pred_fallthru
        _
    $region6: #{_forward_impl.1} parent=1 // loop_footer
      %s18 = sadd.s32 1, %s14
    $region7: #{_forward_impl.1} parent=1 // loop_footer_branch
      %13 = sbr.rel target = $region3
    $region8: #{_forward_impl.1} parent=1 // loop_exit
      _
    %869 = vsyncpa [#allocation3], 1
    %s870 = scalar_lea.sflag [#allocation3], 1
    %871 = vsyncpa %s870, 1

</llo_original>
